<compile_context>
chip_gen: v6e
topology: v6e:2x2x1
jax: 0.10.0
libtpu: 0.0.40
codegen_flags: <defaults>
</compile_context>

<pallas_src>
import functools

import jax
import jax.numpy as jnp
from jax.experimental import pallas as pl
from jax.experimental.pallas import tpu as pltpu


def _round_up(x: int, m: int) -> int:
    return (x + m - 1) // m * m


def _device_kind() -> str:
    try:
        return jax.devices()[0].device_kind.lower()
    except Exception:
        return ""


def _vmem_capacity_bytes() -> int:
    try:
        return int(pltpu.get_tpu_info().vmem_capacity_bytes)
    except Exception:
        pass
    kind = _device_kind()
    if "v7" in kind:
        return 64 << 20
    if "v5" in kind or "v6" in kind:
        return 128 << 20
    return 64 << 20  # conservative default for unknown parts


def _lane_pad() -> int:
    kind = _device_kind()
    if any(v in kind for v in ("v2", "v3", "v4", "v5")):
        return 128        # 128-wide MXU generations
    return 256            # v6e / v7x: 256-deep/wide MXU


def _mlp_fused_kernel(x_ref, *refs, num_layers: int):
    """Fused MLP. refs = (w0, b0, w1, b1, ..., o_ref).

    x_ref : (TM, D0p)   bf16
    w_l   : (Dlp, Dl1p) bf16  (VMEM-resident, constant index_map, Buffered(1))
    b_l   : (1,  Dl1p)  f32
    o_ref : (TM, DLp)   f32
    """
    o_ref = refs[2 * num_layers]
    h = x_ref[...]                       # bf16 activation stream
    y = h
    for li in range(num_layers):
        w = refs[2 * li][...]            # bf16
        b = refs[2 * li + 1][...]        # f32, (1, N) broadcasts over rows
        # MXU: bf16 x bf16 -> f32 accumulation; epilogue in f32.
        y = jnp.dot(h, w, preferred_element_type=jnp.float32) + b
        if li < num_layers - 1:
            # ReLU in f32, pack back to bf16 for the next MXU pass.
            h = jnp.maximum(y, 0.0).astype(jnp.bfloat16)
    o_ref[...] = y.astype(o_ref.dtype)


def init_mlp_params(key, input_dim, hidden_dim, output_dim, num_layers):
    """Deterministic parameter init matching the layer shapes of the torch MLP."""
    h = [hidden_dim] * (num_layers - 1)
    in_dims = [input_dim] + h
    out_dims = h + [output_dim]
    params = []
    for n, k in zip(in_dims, out_dims):
        key, kw, kb = jax.random.split(key, 3)
        # torch Linear weight is (out, in); store transposed (in, out) for the kernel.
        bound = 1.0 / (n ** 0.5)
        w = jax.random.uniform(kw, (n, k), jnp.float32, -bound, bound)
        b = jax.random.uniform(kb, (k,), jnp.float32, -bound, bound)
        params.append((w, b))
    return params


def mlp_forward(x, params, *, tm_max: int = 1024):
    """Forward pass of the MLP. x: (..., input_dim). params: [(w(in,out), b(out,)), ...]."""
    num_layers = len(params)
    lead_shape = x.shape[:-1]
    in_dim = x.shape[-1]
    out_dim = params[-1][0].shape[1]

    x2d = x.reshape(-1, in_dim)
    M = x2d.shape[0]

    # ---- lane-pad every feature dim (zero padding is exact: padded input cols
    # contribute 0; padded output cols get zero weights and zero bias). ----
    lane = _lane_pad()
    dims = [in_dim] + [w.shape[1] for w, _ in params]
    pdims = [_round_up(d, lane) for d in dims]

    padded_wb = []
    for li, (w, b) in enumerate(params):
        kp, np_ = pdims[li], pdims[li + 1]
        wp = jnp.zeros((kp, np_), jnp.float32).at[: w.shape[0], : w.shape[1]].set(w)
        bp = jnp.zeros((1, np_), jnp.float32).at[0, : b.shape[0]].set(b)
        padded_wb.append((wp.astype(jnp.bfloat16), bp))  # weights bf16, bias f32

    # ---- per-TC VMEM budgeting ----
    capacity = _vmem_capacity_bytes()
    budget = int(capacity * 0.75)
    weight_bytes = sum(int(wp.size) * 2 + int(bp.size) * 4 for wp, bp in padded_wb)
    max_kn = max(pdims[li] + pdims[li + 1] for li in range(num_layers))

    def footprint(tm: int) -> int:
        x_tiles = 2 * tm * pdims[0] * 2          # bf16, double-buffered
        o_tiles = 2 * tm * pdims[-1] * 4         # f32, double-buffered
        work = tm * max_kn * 6                    # live bf16 + f32 intermediates
        return weight_bytes + x_tiles + o_tiles + work

    # Row tile: multiple of 16 (bf16 sublane packing), floored at MXU row height.
    TM = min(tm_max, _round_up(M, 16))
    tm_floor = 256
    while TM > tm_floor and footprint(TM) > budget:
        TM = max(tm_floor, TM // 2)
    # v7x megacore: keep the parallel grid a few steps long when M allows.
    while TM > tm_floor and pl.cdiv(M, TM) < 4:
        TM = max(tm_floor, TM // 2)
    # TODO(synk): K/N grid tiling + f32 accumulator scratch for layers whose
    # bf16 weights exceed the residency budget (threshold ~2x lower on v7x).

    Mp = _round_up(M, TM)

    # bf16 activation stream into the kernel (halves x-tile DMA + VMEM bytes).
    x2d = x2d.astype(jnp.bfloat16)
    x2d = jnp.pad(x2d, ((0, Mp - M), (0, pdims[0] - in_dim)))

    grid = (Mp // TM,)

    in_specs = [pl.BlockSpec((TM, pdims[0]), lambda i: (i, 0))]
    flat_wb = []
    for wp, bp in padded_wb:
        # Constant index_map => never re-fetched; single buffer halves VMEM use.
        in_specs.append(pl.BlockSpec(wp.shape, lambda i: (0, 0),
                                     pipeline_mode=pl.Buffered(1)))
        in_specs.append(pl.BlockSpec(bp.shape, lambda i: (0, 0),
                                     pipeline_mode=pl.Buffered(1)))
        flat_wb += [wp, bp]
    out_spec = pl.BlockSpec((TM, pdims[-1]), lambda i: (i, 0))

    # Advisory cost estimate so XLA schedules the custom call sensibly.
    flops = sum(2 * Mp * pdims[li] * pdims[li + 1] for li in range(num_layers))
    bytes_accessed = Mp * pdims[0] * 2 + Mp * pdims[-1] * 4
    bytes_accessed += sum(pdims[li] * pdims[li + 1] * 2 + pdims[li + 1] * 4
                          for li in range(num_layers))
    cost = pl.CostEstimate(flops=flops, transcendentals=0,
                           bytes_accessed=bytes_accessed)

    # Scoped VMEM limit from the real footprint (+25% + 4 MiB headroom),
    # clamped to 90% of physical capacity.
    vmem_limit = int(min(capacity * 0.9,
                         max(footprint(TM) * 1.25 + (4 << 20), 32 << 20)))

    kernel = functools.partial(_mlp_fused_kernel, num_layers=num_layers)
    out = pl.pallas_call(
        kernel,
        out_shape=jax.ShapeDtypeStruct((Mp, pdims[-1]), jnp.float32),
        grid=grid,
        in_specs=in_specs,
        out_specs=out_spec,
        compiler_params=pltpu.CompilerParams(
            dimension_semantics=("parallel",),
            vmem_limit_bytes=vmem_limit),
        cost_estimate=cost,
    )(x2d, *flat_wb)

    out = out[:M, :out_dim]
    return out.reshape(*lead_shape, out_dim)


def _reference_forward(x, params, *, bf16_stream: bool):
    """Pure-JAX reference. bf16_stream=True mirrors the kernel's numerics."""
    num_layers = len(params)
    y = x.astype(jnp.float32)
    h = y.astype(jnp.bfloat16) if bf16_stream else y
    for i, (w, b) in enumerate(params):
        wd = w.astype(jnp.bfloat16) if bf16_stream else w
        y = jnp.dot(h, wd, preferred_element_type=jnp.float32) + b
        if i < num_layers - 1:
            h = jnp.maximum(y, 0.0)
            if bf16_stream:
                h = h.astype(jnp.bfloat16)
    return y


if __name__ == "__main__":
    key = jax.random.PRNGKey(0)
    k_x, k_p = jax.random.split(key)

    batch, seq = 2, 8
    input_dim, hidden_dim, output_dim, num_layers = 32, 64, 16, 3

    x = jax.random.normal(k_x, (batch, seq, input_dim), jnp.float32)
    params = init_mlp_params(k_p, input_dim, hidden_dim, output_dim, num_layers)

    out = mlp_forward(x, params)
    out = jax.block_until_ready(out)

    assert out.shape == (batch, seq, output_dim), out.shape

    # Tight check vs a reference with identical bf16 activation/weight stream.
    ref_bf16 = _reference_forward(x, params, bf16_stream=True)
    assert jnp.allclose(out, ref_bf16, atol=2e-3, rtol=2e-3), "mismatch vs bf16 reference"

    # Loose check vs the full-f32 reference (bf16 MXU rounding tolerance).
    ref_f32 = _reference_forward(x, params, bf16_stream=False)
    assert jnp.allclose(out, ref_f32, atol=5e-2, rtol=5e-2), "mismatch vs f32 reference"

    print("KERNEL_OK")
</pallas_src>

<mosaic_0001>
module attributes {stable_mosaic.version = 11 : i64} {
  func.func @_mlp_fused_kernel(%arg0: i32, %arg1: memref<16x256xbf16, #tpu.memory_space<vmem>>, %arg2: memref<256x256xbf16, #tpu.memory_space<vmem>>, %arg3: memref<1x256xf32, #tpu.memory_space<vmem>>, %arg4: memref<256x256xbf16, #tpu.memory_space<vmem>>, %arg5: memref<1x256xf32, #tpu.memory_space<vmem>>, %arg6: memref<256x256xbf16, #tpu.memory_space<vmem>>, %arg7: memref<1x256xf32, #tpu.memory_space<vmem>>, %arg8: memref<16x256xf32, #tpu.memory_space<vmem>>) attributes {dimension_semantics = [#tpu.dimension_semantics<parallel>], iteration_bounds = array<i64: 1>, scalar_prefetch = 0 : i64, scratch_operands = 0 : i64, tpu.core_type = #tpu.core_type<tc>, window_params = [{transform_indices = @transform_0, window_bounds = array<i64: 16, 256>}, {pipeline_mode = #tpu.pipeline_mode<synchronous>, transform_indices = @transform_1, window_bounds = array<i64: 256, 256>}, {pipeline_mode = #tpu.pipeline_mode<synchronous>, transform_indices = @transform_2, window_bounds = array<i64: 1, 256>}, {pipeline_mode = #tpu.pipeline_mode<synchronous>, transform_indices = @transform_3, window_bounds = array<i64: 256, 256>}, {pipeline_mode = #tpu.pipeline_mode<synchronous>, transform_indices = @transform_4, window_bounds = array<i64: 1, 256>}, {pipeline_mode = #tpu.pipeline_mode<synchronous>, transform_indices = @transform_5, window_bounds = array<i64: 256, 256>}, {pipeline_mode = #tpu.pipeline_mode<synchronous>, transform_indices = @transform_6, window_bounds = array<i64: 1, 256>}, {transform_indices = @transform_7, window_bounds = array<i64: 16, 256>}]} {
    %c0 = arith.constant 0 : index
    %c0_0 = arith.constant 0 : index
    %0 = vector.load %arg1[%c0, %c0_0] : memref<16x256xbf16, #tpu.memory_space<vmem>>, vector<16x256xbf16>
    %c0_1 = arith.constant 0 : index
    %c0_2 = arith.constant 0 : index
    %1 = vector.load %arg2[%c0_1, %c0_2] : memref<256x256xbf16, #tpu.memory_space<vmem>>, vector<256x256xbf16>
    %c0_3 = arith.constant 0 : index
    %c0_4 = arith.constant 0 : index
    %2 = vector.load %arg3[%c0_3, %c0_4] : memref<1x256xf32, #tpu.memory_space<vmem>>, vector<1x256xf32>
    %cst = arith.constant dense<0.000000e+00> : vector<16x256xf32>
    %3 = tpu.matmul %0, %1, %cst {dimension_numbers = #tpu.dot_dimension_numbers<[1], [0], [0], [1], [0, 0, 1, 1], [], []>} : vector<16x256xbf16>, vector<256x256xbf16>, vector<16x256xf32> -> vector<16x256xf32>
    %4 = vector.broadcast %2 : vector<1x256xf32> to vector<16x256xf32>
    %5 = arith.addf %3, %4 : vector<16x256xf32>
    %cst_5 = arith.constant 0.000000e+00 : f32
    %6 = vector.broadcast %cst_5 : f32 to vector<16x256xf32>
    %7 = arith.maximumf %5, %6 : vector<16x256xf32>
    %8 = arith.truncf %7 : vector<16x256xf32> to vector<16x256xbf16>
    %c0_6 = arith.constant 0 : index
    %c0_7 = arith.constant 0 : index
    %9 = vector.load %arg4[%c0_6, %c0_7] : memref<256x256xbf16, #tpu.memory_space<vmem>>, vector<256x256xbf16>
    %c0_8 = arith.constant 0 : index
    %c0_9 = arith.constant 0 : index
    %10 = vector.load %arg5[%c0_8, %c0_9] : memref<1x256xf32, #tpu.memory_space<vmem>>, vector<1x256xf32>
    %cst_10 = arith.constant dense<0.000000e+00> : vector<16x256xf32>
    %11 = tpu.matmul %8, %9, %cst_10 {dimension_numbers = #tpu.dot_dimension_numbers<[1], [0], [0], [1], [0, 0, 1, 1], [], []>} : vector<16x256xbf16>, vector<256x256xbf16>, vector<16x256xf32> -> vector<16x256xf32>
    %12 = vector.broadcast %10 : vector<1x256xf32> to vector<16x256xf32>
    %13 = arith.addf %11, %12 : vector<16x256xf32>
    %cst_11 = arith.constant 0.000000e+00 : f32
    %14 = vector.broadcast %cst_11 : f32 to vector<16x256xf32>
    %15 = arith.maximumf %13, %14 : vector<16x256xf32>
    %16 = arith.truncf %15 : vector<16x256xf32> to vector<16x256xbf16>
    %c0_12 = arith.constant 0 : index
    %c0_13 = arith.constant 0 : index
    %17 = vector.load %arg6[%c0_12, %c0_13] : memref<256x256xbf16, #tpu.memory_space<vmem>>, vector<256x256xbf16>
    %c0_14 = arith.constant 0 : index
    %c0_15 = arith.constant 0 : index
    %18 = vector.load %arg7[%c0_14, %c0_15] : memref<1x256xf32, #tpu.memory_space<vmem>>, vector<1x256xf32>
    %cst_16 = arith.constant dense<0.000000e+00> : vector<16x256xf32>
    %19 = tpu.matmul %16, %17, %cst_16 {dimension_numbers = #tpu.dot_dimension_numbers<[1], [0], [0], [1], [0, 0, 1, 1], [], []>} : vector<16x256xbf16>, vector<256x256xbf16>, vector<16x256xf32> -> vector<16x256xf32>
    %20 = vector.broadcast %18 : vector<1x256xf32> to vector<16x256xf32>
    %21 = arith.addf %19, %20 : vector<16x256xf32>
    %c0_17 = arith.constant 0 : index
    %c0_18 = arith.constant 0 : index
    %22 = vector.load %arg8[%c0_17, %c0_18] : memref<16x256xf32, #tpu.memory_space<vmem>>, vector<16x256xf32>
    tpu.vector_store %arg8[%c0_17, %c0_18], %21 {strides = array<i32>} : memref<16x256xf32, #tpu.memory_space<vmem>>, vector<16x256xf32>,
    return
  }
  func.func @transform_0(%arg0: i32) -> (i32, i32) {
    %c0_i32 = arith.constant 0 : i32
    %c0_i32_0 = arith.constant 0 : i32
    return %arg0, %c0_i32 : i32, i32
  }
  func.func @transform_1(%arg0: i32) -> (i32, i32) {
    %c0_i32 = arith.constant 0 : i32
    %c0_i32_0 = arith.constant 0 : i32
    %c0_i32_1 = arith.constant 0 : i32
    return %c0_i32, %c0_i32_0 : i32, i32
  }
  func.func @transform_2(%arg0: i32) -> (i32, i32) {
    %c0_i32 = arith.constant 0 : i32
    %c0_i32_0 = arith.constant 0 : i32
    %c0_i32_1 = arith.constant 0 : i32
    return %c0_i32, %c0_i32_0 : i32, i32
  }
  func.func @transform_3(%arg0: i32) -> (i32, i32) {
    %c0_i32 = arith.constant 0 : i32
    %c0_i32_0 = arith.constant 0 : i32
    %c0_i32_1 = arith.constant 0 : i32
    return %c0_i32, %c0_i32_0 : i32, i32
  }
  func.func @transform_4(%arg0: i32) -> (i32, i32) {
    %c0_i32 = arith.constant 0 : i32
    %c0_i32_0 = arith.constant 0 : i32
    %c0_i32_1 = arith.constant 0 : i32
    return %c0_i32, %c0_i32_0 : i32, i32
  }
  func.func @transform_5(%arg0: i32) -> (i32, i32) {
    %c0_i32 = arith.constant 0 : i32
    %c0_i32_0 = arith.constant 0 : i32
    %c0_i32_1 = arith.constant 0 : i32
    return %c0_i32, %c0_i32_0 : i32, i32
  }
  func.func @transform_6(%arg0: i32) -> (i32, i32) {
    %c0_i32 = arith.constant 0 : i32
    %c0_i32_0 = arith.constant 0 : i32
    %c0_i32_1 = arith.constant 0 : i32
    return %c0_i32, %c0_i32_0 : i32, i32
  }
  func.func @transform_7(%arg0: i32) -> (i32, i32) {
    %c0_i32 = arith.constant 0 : i32
    %c0_i32_0 = arith.constant 0 : i32
    return %arg0, %c0_i32 : i32, i32
  }
}

</mosaic_0001>

<llo_original>
// kernel: tpu_custom_call.1
$region0: #{tpu_custom_call.1}
  #allocation0 [shape = 'u32[]', space=smem, size = 0x4, offset = 0x4, fixed_abs, tag = 'smem constant byte address 0x4 - core index']
  #allocation1 [shape = 'u32[144,128]{1,0:T(1,128)}', space=vmem, size = 0x12000, scoped, tag = 'internal scratch']
  %s0 = inlined_call_operand.hbm [shape: bf16[16,256], index: 0, kind: input, shape index: {}]
  %s1 = inlined_call_operand.hbm [shape: bf16[256,256], index: 1, kind: input, shape index: {}]
  %s2 = inlined_call_operand.vmem [shape: f32[1,256], index: 2, kind: input, shape index: {}]
  %s3 = inlined_call_operand.hbm [shape: bf16[256,256], index: 3, kind: input, shape index: {}]
  %s4 = inlined_call_operand.vmem [shape: f32[1,256], index: 4, kind: input, shape index: {}]
  %s5 = inlined_call_operand.hbm [shape: bf16[256,256], index: 5, kind: input, shape index: {}]
  %s6 = inlined_call_operand.vmem [shape: f32[1,256], index: 6, kind: input, shape index: {}]
  %s7 = inlined_call_operand.hbm [shape: f32[16,256], index: 7, kind: output, shape index: {}]
  %s8 = sld [smem:[#allocation0]]
  $region54: #{tpu_custom_call.1} parent=0
    _
  %s10 = ssub.s32 1, %s8
  %s11 = scalar_select 0, %s10, %s8
  $region1: #{tpu_custom_call.1} parent=0
    #allocation2 [shape = 'u8[8192]{0}', space=vmem, size = 0x2000, scoped, tag = 'input window, operand 0, single buffered']
    #allocation3 [shape = 's32[1]{0}', space=sflag, size = 0x4, scoped, tag = 'scoped memory for tpu_custom_call.1']
    #allocation4 [shape = 's32[1]{0}', space=sflag, size = 0x4, scoped, tag = 'scoped memory for tpu_custom_call.1']
    #allocation5 [shape = 'u8[131072]{0}', space=vmem, size = 0x20000, scoped, tag = 'input window, operand 1, single buffered']
    #allocation6 [shape = 's32[1]{0}', space=sflag, size = 0x4, scoped, tag = 'scoped memory for tpu_custom_call.1']
    #allocation7 [shape = 'u8[131072]{0}', space=vmem, size = 0x20000, scoped, tag = 'input window, operand 3, single buffered']
    #allocation8 [shape = 'u8[131072]{0}', space=vmem, size = 0x20000, scoped, tag = 'input window, operand 5, single buffered']
    #allocation9 [shape = 's32[1]{0}', space=sflag, size = 0x4, scoped, tag = 'scoped memory for tpu_custom_call.1']
    #allocation10 [shape = 'u8[16384]{0}', space=vmem, size = 0x4000, scoped, tag = 'output window, operand 0, single buffered']
    %12 = vsyncpa [#allocation3], 0
    %13 = vsyncpa [#allocation6], 0
    %14 = vsyncpa [#allocation9], 0
    %15 = vsyncpa [#allocation4], 0
    // Predicated region
    $region2: #{tpu_custom_call.1} parent=1 // pred_check
      _
    $region3: #{tpu_custom_call.1} parent=1 // pred_check_branch
      %17 = sbr.rel (0) target = $region5
    $region4: #{tpu_custom_call.1} parent=1 // pred_region
      %s19 = ssub.s32 256, 256
      %20 = vsyncadd [#allocation3], %s19
      %s21 = sshll.u32 [#allocation2], 4
      %s22 = int_to_ptr.vmem [resolvable:$true] %s21
      %27 = dma.hbm_to_vmem [thread:$0]  %s0, 256, %s22, [#allocation3], 128, 128, 8
    $region5: #{tpu_custom_call.1} parent=1 // pred_fallthru
      _
    // Predicated region
    $region6: #{tpu_custom_call.1} parent=1 // pred_check
      _
    $region7: #{tpu_custom_call.1} parent=1 // pred_check_branch
      %29 = sbr.rel (0) target = $region9
    $region8: #{tpu_custom_call.1} parent=1 // pred_region
      %s31 = ssub.s32 4096, 4096
      %32 = vsyncadd [#allocation6], %s31
      %s33 = sshll.u32 [#allocation5], 4
      %s34 = int_to_ptr.vmem [resolvable:$true] %s33
      %39 = dma.hbm_to_vmem [thread:$0]  %s1, 4096, %s34, [#allocation6], 128, 128, 8
    $region9: #{tpu_custom_call.1} parent=1 // pred_fallthru
      _
    // Predicated region
    $region10: #{tpu_custom_call.1} parent=1 // pred_check
      _
    $region11: #{tpu_custom_call.1} parent=1 // pred_check_branch
      %41 = sbr.rel (0) target = $region13
    $region12: #{tpu_custom_call.1} parent=1 // pred_region
      _
    $region13: #{tpu_custom_call.1} parent=1 // pred_fallthru
      _
    // Predicated region
    $region14: #{tpu_custom_call.1} parent=1 // pred_check
      _
    $region15: #{tpu_custom_call.1} parent=1 // pred_check_branch
      %43 = sbr.rel (0) target = $region17
    $region16: #{tpu_custom_call.1} parent=1 // pred_region
      %s45 = ssub.s32 4096, 4096
      %46 = vsyncadd [#allocation6], %s45
      %s47 = sshll.u32 [#allocation7], 4
      %s48 = int_to_ptr.vmem [resolvable:$true] %s47
      %53 = dma.hbm_to_vmem [thread:$0]  %s3, 4096, %s48, [#allocation6], 128, 128, 8
    $region17: #{tpu_custom_call.1} parent=1 // pred_fallthru
      _
    // Predicated region
    $region18: #{tpu_custom_call.1} parent=1 // pred_check
      _
    $region19: #{tpu_custom_call.1} parent=1 // pred_check_branch
      %55 = sbr.rel (0) target = $region21
    $region20: #{tpu_custom_call.1} parent=1 // pred_region
      _
    $region21: #{tpu_custom_call.1} parent=1 // pred_fallthru
      _
    // Predicated region
    $region22: #{tpu_custom_call.1} parent=1 // pred_check
      _
    $region23: #{tpu_custom_call.1} parent=1 // pred_check_branch
      %57 = sbr.rel (0) target = $region25
    $region24: #{tpu_custom_call.1} parent=1 // pred_region
      %s59 = ssub.s32 4096, 4096
      %60 = vsyncadd [#allocation9], %s59
      %s61 = sshll.u32 [#allocation8], 4
      %s62 = int_to_ptr.vmem [resolvable:$true] %s61
      %67 = dma.hbm_to_vmem [thread:$0]  %s5, 4096, %s62, [#allocation9], 128, 128, 8
    $region25: #{tpu_custom_call.1} parent=1 // pred_fallthru
      _
    // Predicated region
    $region26: #{tpu_custom_call.1} parent=1 // pred_check
      _
    $region27: #{tpu_custom_call.1} parent=1 // pred_check_branch
      %69 = sbr.rel (0) target = $region29
    $region28: #{tpu_custom_call.1} parent=1 // pred_region
      _
    $region29: #{tpu_custom_call.1} parent=1 // pred_fallthru
      _
    // Predicated region
    $region30: #{tpu_custom_call.1} parent=1 // pred_check
      _
    $region31: #{tpu_custom_call.1} parent=1 // pred_check_branch
      %71 = sbr.rel (0) target = $region33
    $region32: #{tpu_custom_call.1} parent=1 // pred_region
      %72 = dma.done [#allocation3], 256
    $region33: #{tpu_custom_call.1} parent=1 // pred_fallthru
      _
    // Predicated region
    $region34: #{tpu_custom_call.1} parent=1 // pred_check
      _
    $region35: #{tpu_custom_call.1} parent=1 // pred_check_branch
      %74 = sbr.rel (0) target = $region37
    $region36: #{tpu_custom_call.1} parent=1 // pred_region
      %75 = dma.done [#allocation6], 4096
    $region37: #{tpu_custom_call.1} parent=1 // pred_fallthru
      _
    // Predicated region
    $region38: #{tpu_custom_call.1} parent=1 // pred_check
      _
    $region39: #{tpu_custom_call.1} parent=1 // pred_check_branch
      %77 = sbr.rel (0) target = $region41
    $region40: #{tpu_custom_call.1} parent=1 // pred_region
      %78 = dma.done [#allocation6], 4096
    $region41: #{tpu_custom_call.1} parent=1 // pred_fallthru
      _
    // Predicated region
    $region42: #{tpu_custom_call.1} parent=1 // pred_check
      _
    $region43: #{tpu_custom_call.1} parent=1 // pred_check_branch
      %80 = sbr.rel (0) target = $region45
    $region44: #{tpu_custom_call.1} parent=1 // pred_region
      %81 = dma.done [#allocation9], 4096
    $region45: #{tpu_custom_call.1} parent=1 // pred_fallthru
      _
    %v82 = vld [vmem:[#allocation2] sm:$0xff]
    %v83 = vld [vmem:[#allocation2 + $0x8] sm:$0xff]
    %v84 = vld [vmem:[#allocation5] sm:$0xff]
    %v85 = vld [vmem:[#allocation5 + $0x8] sm:$0xff]
    %v86 = vld [vmem:[#allocation5 + $0x10] sm:$0xff]
    %v87 = vld [vmem:[#allocation5 + $0x18] sm:$0xff]
    %v88 = vld [vmem:[#allocation5 + $0x20] sm:$0xff]
    %v89 = vld [vmem:[#allocation5 + $0x28] sm:$0xff]
    %v90 = vld [vmem:[#allocation5 + $0x30] sm:$0xff]
    %v91 = vld [vmem:[#allocation5 + $0x38] sm:$0xff]
    %v92 = vld [vmem:[#allocation5 + $0x40] sm:$0xff]
    %v93 = vld [vmem:[#allocation5 + $0x48] sm:$0xff]
    %v94 = vld [vmem:[#allocation5 + $0x50] sm:$0xff]
    %v95 = vld [vmem:[#allocation5 + $0x58] sm:$0xff]
    %v96 = vld [vmem:[#allocation5 + $0x60] sm:$0xff]
    %v97 = vld [vmem:[#allocation5 + $0x68] sm:$0xff]
    %v98 = vld [vmem:[#allocation5 + $0x70] sm:$0xff]
    %v99 = vld [vmem:[#allocation5 + $0x78] sm:$0xff]
    %v100 = vld [vmem:[#allocation5 + $0x80] sm:$0xff]
    %v101 = vld [vmem:[#allocation5 + $0x88] sm:$0xff]
    %v102 = vld [vmem:[#allocation5 + $0x90] sm:$0xff]
    %v103 = vld [vmem:[#allocation5 + $0x98] sm:$0xff]
    %v104 = vld [vmem:[#allocation5 + $0xa0] sm:$0xff]
    %v105 = vld [vmem:[#allocation5 + $0xa8] sm:$0xff]
    %v106 = vld [vmem:[#allocation5 + $0xb0] sm:$0xff]
    %v107 = vld [vmem:[#allocation5 + $0xb8] sm:$0xff]
    %v108 = vld [vmem:[#allocation5 + $0xc0] sm:$0xff]
    %v109 = vld [vmem:[#allocation5 + $0xc8] sm:$0xff]
    %v110 = vld [vmem:[#allocation5 + $0xd0] sm:$0xff]
    %v111 = vld [vmem:[#allocation5 + $0xd8] sm:$0xff]
    %v112 = vld [vmem:[#allocation5 + $0xe0] sm:$0xff]
    %v113 = vld [vmem:[#allocation5 + $0xe8] sm:$0xff]
    %v114 = vld [vmem:[#allocation5 + $0xf0] sm:$0xff]
    %v115 = vld [vmem:[#allocation5 + $0xf8] sm:$0xff]
    %v116 = vld [vmem:[%s2] sm:$0x3]
    %v118 = vlaneseq
    %v119 = vshrl.u32 %v118, 7
    %v120 = vsub.s32 0, %v119
    %v121 = vrot.slane %v116, %v120
    %v122 = vlaneseq
    %v123 = vshrl.u32 %v122, 7
    %v124 = vsub.s32 1, %v123
    %v125 = vrot.slane %v116, %v124
    %v130 = vunpack.c.l.b16 %v82
    %v131 = vunpack.c.h.b16 %v82
    %v132 = vunpack.c.l.b16 %v83
    %v133 = vunpack.c.h.b16 %v83
    %v134 = vpack.c.b16 %v132, %v130
    %v135 = vpack.c.b16 %v133, %v131
    %v170 = vunpack.c.l.b16 %v84
    %v171 = vunpack.c.h.b16 %v84
    %v172 = vunpack.c.l.b16 %v85
    %v173 = vunpack.c.h.b16 %v85
    %v174 = vunpack.c.l.b16 %v86
    %v175 = vunpack.c.h.b16 %v86
    %v176 = vunpack.c.l.b16 %v87
    %v177 = vunpack.c.h.b16 %v87
    %v178 = vunpack.c.l.b16 %v88
    %v179 = vunpack.c.h.b16 %v88
    %v180 = vunpack.c.l.b16 %v89
    %v181 = vunpack.c.h.b16 %v89
    %v182 = vunpack.c.l.b16 %v90
    %v183 = vunpack.c.h.b16 %v90
    %v184 = vunpack.c.l.b16 %v91
    %v185 = vunpack.c.h.b16 %v91
    %v186 = vunpack.c.l.b16 %v92
    %v187 = vunpack.c.h.b16 %v92
    %v188 = vunpack.c.l.b16 %v93
    %v189 = vunpack.c.h.b16 %v93
    %v190 = vunpack.c.l.b16 %v94
    %v191 = vunpack.c.h.b16 %v94
    %v192 = vunpack.c.l.b16 %v95
    %v193 = vunpack.c.h.b16 %v95
    %v194 = vunpack.c.l.b16 %v96
    %v195 = vunpack.c.h.b16 %v96
    %v196 = vunpack.c.l.b16 %v97
    %v197 = vunpack.c.h.b16 %v97
    %v198 = vunpack.c.l.b16 %v98
    %v199 = vunpack.c.h.b16 %v98
    %v200 = vunpack.c.l.b16 %v99
    %v201 = vunpack.c.h.b16 %v99
    %v202 = vunpack.c.l.b16 %v100
    %v203 = vunpack.c.h.b16 %v100
    %v204 = vunpack.c.l.b16 %v101
    %v205 = vunpack.c.h.b16 %v101
    %v206 = vunpack.c.l.b16 %v102
    %v207 = vunpack.c.h.b16 %v102
    %v208 = vunpack.c.l.b16 %v103
    %v209 = vunpack.c.h.b16 %v103
    %v210 = vunpack.c.l.b16 %v104
    %v211 = vunpack.c.h.b16 %v104
    %v212 = vunpack.c.l.b16 %v105
    %v213 = vunpack.c.h.b16 %v105
    %v214 = vunpack.c.l.b16 %v106
    %v215 = vunpack.c.h.b16 %v106
    %v216 = vunpack.c.l.b16 %v107
    %v217 = vunpack.c.h.b16 %v107
    %v218 = vunpack.c.l.b16 %v108
    %v219 = vunpack.c.h.b16 %v108
    %v220 = vunpack.c.l.b16 %v109
    %v221 = vunpack.c.h.b16 %v109
    %v222 = vunpack.c.l.b16 %v110
    %v223 = vunpack.c.h.b16 %v110
    %v224 = vunpack.c.l.b16 %v111
    %v225 = vunpack.c.h.b16 %v111
    %v226 = vunpack.c.l.b16 %v112
    %v227 = vunpack.c.h.b16 %v112
    %v228 = vunpack.c.l.b16 %v113
    %v229 = vunpack.c.h.b16 %v113
    %v230 = vunpack.c.l.b16 %v114
    %v231 = vunpack.c.h.b16 %v114
    %v232 = vunpack.c.l.b16 %v115
    %v233 = vunpack.c.h.b16 %v115
    %v234 = vpack.c.b16 %v172, %v170
    %v235 = vpack.c.b16 %v173, %v171
    %v236 = vpack.c.b16 %v176, %v174
    %v237 = vpack.c.b16 %v177, %v175
    %v238 = vpack.c.b16 %v180, %v178
    %v239 = vpack.c.b16 %v181, %v179
    %v240 = vpack.c.b16 %v184, %v182
    %v241 = vpack.c.b16 %v185, %v183
    %v242 = vpack.c.b16 %v188, %v186
    %v243 = vpack.c.b16 %v189, %v187
    %v244 = vpack.c.b16 %v192, %v190
    %v245 = vpack.c.b16 %v193, %v191
    %v246 = vpack.c.b16 %v196, %v194
    %v247 = vpack.c.b16 %v197, %v195
    %v248 = vpack.c.b16 %v200, %v198
    %v249 = vpack.c.b16 %v201, %v199
    %v250 = vpack.c.b16 %v204, %v202
    %v251 = vpack.c.b16 %v205, %v203
    %v252 = vpack.c.b16 %v208, %v206
    %v253 = vpack.c.b16 %v209, %v207
    %v254 = vpack.c.b16 %v212, %v210
    %v255 = vpack.c.b16 %v213, %v211
    %v256 = vpack.c.b16 %v216, %v214
    %v257 = vpack.c.b16 %v217, %v215
    %v258 = vpack.c.b16 %v220, %v218
    %v259 = vpack.c.b16 %v221, %v219
    %v260 = vpack.c.b16 %v224, %v222
    %v261 = vpack.c.b16 %v225, %v223
    %v262 = vpack.c.b16 %v228, %v226
    %v263 = vpack.c.b16 %v229, %v227
    %v264 = vpack.c.b16 %v232, %v230
    %v265 = vpack.c.b16 %v233, %v231
    %298 = vmatprep.subr.bf16.mxu0 %v249
    %299 = vmatpush1.bf16.msra.mxu0 %v248
    %300 = vmatprep.subr.bf16.mxu0 %v247
    %301 = vmatpush1.bf16.msra.mxu0 %v246
    %302 = vmatprep.subr.bf16.mxu0 %v245
    %303 = vmatpush1.bf16.msra.mxu0 %v244
    %304 = vmatprep.subr.bf16.mxu0 %v243
    %305 = vmatpush1.bf16.msra.mxu0 %v242
    %306 = vmatprep.subr.bf16.mxu0 %v241
    %307 = vmatpush1.bf16.msra.mxu0 %v240
    %308 = vmatprep.subr.bf16.mxu0 %v239
    %309 = vmatpush1.bf16.msra.mxu0 %v238
    %310 = vmatprep.subr.bf16.mxu0 %v237
    %311 = vmatpush1.bf16.msra.mxu0 %v236
    %312 = vmatprep.subr.bf16.mxu0 %v235
    %313 = vmatpush1.bf16.msra.mxu0 %v234
    %314 = vmatprep.subr.bf16.mxu0 %v265
    %315 = vmatpush2.bf16.msra.mxu0 %v264
    %316 = vmatprep.subr.bf16.mxu0 %v263
    %317 = vmatpush2.bf16.msra.mxu0 %v262
    %318 = vmatprep.subr.bf16.mxu0 %v261
    %319 = vmatpush2.bf16.msra.mxu0 %v260
    %320 = vmatprep.subr.bf16.mxu0 %v259
    %321 = vmatpush2.bf16.msra.mxu0 %v258
    %322 = vmatprep.subr.bf16.mxu0 %v257
    %323 = vmatpush2.bf16.msra.mxu0 %v256
    %324 = vmatprep.subr.bf16.mxu0 %v255
    %325 = vmatpush2.bf16.msra.mxu0 %v254
    %326 = vmatprep.subr.bf16.mxu0 %v253
    %327 = vmatpush2.bf16.msra.mxu0 %v252
    %328 = vmatprep.subr.bf16.mxu0 %v251
    %329 = vmatpush2.bf16.msra.mxu0 %v250
    %330 = vmatprep.mubr.bf16.mxu0 %v135
    %331 = vmatmul.mubr.bf16.gmra.mxu0 %v134
    %v332 = vpop.f32.mrf.mxu0
    %v333 = vadd.f32 %v121, %v332
    %v334 = vpop.f32.mrf.mxu0
    %v335 = vadd.f32 %v125, %v334
    %v336 = vpop.f32.mrf.mxu0
    %v337 = vadd.f32 %v121, %v336
    %v338 = vpop.f32.mrf.mxu0
    %v339 = vadd.f32 %v125, %v338
    %340 = vdwg.mxu0
    %v341 = vmax.f32 %v333, 0.0
    %v342 = vmax.f32 %v335, 0.0
    %v343 = vmax.f32 %v337, 0.0
    %v344 = vmax.f32 %v339, 0.0
    %v345 = vpack.c.bf16 %v343, %v341
    %v346 = vpack.c.bf16 %v344, %v342
    %v347 = vld [vmem:[#allocation7] sm:$0xff]
    %v348 = vld [vmem:[#allocation7 + $0x8] sm:$0xff]
    %v349 = vld [vmem:[#allocation7 + $0x10] sm:$0xff]
    %v350 = vld [vmem:[#allocation7 + $0x18] sm:$0xff]
    %v351 = vld [vmem:[#allocation7 + $0x20] sm:$0xff]
    %v352 = vld [vmem:[#allocation7 + $0x28] sm:$0xff]
    %v353 = vld [vmem:[#allocation7 + $0x30] sm:$0xff]
    %v354 = vld [vmem:[#allocation7 + $0x38] sm:$0xff]
    %v355 = vld [vmem:[#allocation7 + $0x40] sm:$0xff]
    %v356 = vld [vmem:[#allocation7 + $0x48] sm:$0xff]
    %v357 = vld [vmem:[#allocation7 + $0x50] sm:$0xff]
    %v358 = vld [vmem:[#allocation7 + $0x58] sm:$0xff]
    %v359 = vld [vmem:[#allocation7 + $0x60] sm:$0xff]
    %v360 = vld [vmem:[#allocation7 + $0x68] sm:$0xff]
    %v361 = vld [vmem:[#allocation7 + $0x70] sm:$0xff]
    %v362 = vld [vmem:[#allocation7 + $0x78] sm:$0xff]
    %v363 = vld [vmem:[#allocation7 + $0x80] sm:$0xff]
    %v364 = vld [vmem:[#allocation7 + $0x88] sm:$0xff]
    %v365 = vld [vmem:[#allocation7 + $0x90] sm:$0xff]
    %v366 = vld [vmem:[#allocation7 + $0x98] sm:$0xff]
    %v367 = vld [vmem:[#allocation7 + $0xa0] sm:$0xff]
    %v368 = vld [vmem:[#allocation7 + $0xa8] sm:$0xff]
    %v369 = vld [vmem:[#allocation7 + $0xb0] sm:$0xff]
    %v370 = vld [vmem:[#allocation7 + $0xb8] sm:$0xff]
    %v371 = vld [vmem:[#allocation7 + $0xc0] sm:$0xff]
    %v372 = vld [vmem:[#allocation7 + $0xc8] sm:$0xff]
    %v373 = vld [vmem:[#allocation7 + $0xd0] sm:$0xff]
    %v374 = vld [vmem:[#allocation7 + $0xd8] sm:$0xff]
    %v375 = vld [vmem:[#allocation7 + $0xe0] sm:$0xff]
    %v376 = vld [vmem:[#allocation7 + $0xe8] sm:$0xff]
    %v377 = vld [vmem:[#allocation7 + $0xf0] sm:$0xff]
    %v378 = vld [vmem:[#allocation7 + $0xf8] sm:$0xff]
    %v379 = vld [vmem:[%s4] sm:$0x3]
    %v381 = vlaneseq
    %v382 = vshrl.u32 %v381, 7
    %v383 = vsub.s32 0, %v382
    %v384 = vrot.slane %v379, %v383
    %v385 = vlaneseq
    %v386 = vshrl.u32 %v385, 7
    %v387 = vsub.s32 1, %v386
    %v388 = vrot.slane %v379, %v387
    %v423 = vunpack.c.l.b16 %v347
    %v424 = vunpack.c.h.b16 %v347
    %v425 = vunpack.c.l.b16 %v348
    %v426 = vunpack.c.h.b16 %v348
    %v427 = vunpack.c.l.b16 %v349
    %v428 = vunpack.c.h.b16 %v349
    %v429 = vunpack.c.l.b16 %v350
    %v430 = vunpack.c.h.b16 %v350
    %v431 = vunpack.c.l.b16 %v351
    %v432 = vunpack.c.h.b16 %v351
    %v433 = vunpack.c.l.b16 %v352
    %v434 = vunpack.c.h.b16 %v352
    %v435 = vunpack.c.l.b16 %v353
    %v436 = vunpack.c.h.b16 %v353
    %v437 = vunpack.c.l.b16 %v354
    %v438 = vunpack.c.h.b16 %v354
    %v439 = vunpack.c.l.b16 %v355
    %v440 = vunpack.c.h.b16 %v355
    %v441 = vunpack.c.l.b16 %v356
    %v442 = vunpack.c.h.b16 %v356
    %v443 = vunpack.c.l.b16 %v357
    %v444 = vunpack.c.h.b16 %v357
    %v445 = vunpack.c.l.b16 %v358
    %v446 = vunpack.c.h.b16 %v358
    %v447 = vunpack.c.l.b16 %v359
    %v448 = vunpack.c.h.b16 %v359
    %v449 = vunpack.c.l.b16 %v360
    %v450 = vunpack.c.h.b16 %v360
    %v451 = vunpack.c.l.b16 %v361
    %v452 = vunpack.c.h.b16 %v361
    %v453 = vunpack.c.l.b16 %v362
    %v454 = vunpack.c.h.b16 %v362
    %v455 = vunpack.c.l.b16 %v363
    %v456 = vunpack.c.h.b16 %v363
    %v457 = vunpack.c.l.b16 %v364
    %v458 = vunpack.c.h.b16 %v364
    %v459 = vunpack.c.l.b16 %v365
    %v460 = vunpack.c.h.b16 %v365
    %v461 = vunpack.c.l.b16 %v366
    %v462 = vunpack.c.h.b16 %v366
    %v463 = vunpack.c.l.b16 %v367
    %v464 = vunpack.c.h.b16 %v367
    %v465 = vunpack.c.l.b16 %v368
    %v466 = vunpack.c.h.b16 %v368
    %v467 = vunpack.c.l.b16 %v369
    %v468 = vunpack.c.h.b16 %v369
    %v469 = vunpack.c.l.b16 %v370
    %v470 = vunpack.c.h.b16 %v370
    %v471 = vunpack.c.l.b16 %v371
    %v472 = vunpack.c.h.b16 %v371
    %v473 = vunpack.c.l.b16 %v372
    %v474 = vunpack.c.h.b16 %v372
    %v475 = vunpack.c.l.b16 %v373
    %v476 = vunpack.c.h.b16 %v373
    %v477 = vunpack.c.l.b16 %v374
    %v478 = vunpack.c.h.b16 %v374
    %v479 = vunpack.c.l.b16 %v375
    %v480 = vunpack.c.h.b16 %v375
    %v481 = vunpack.c.l.b16 %v376
    %v482 = vunpack.c.h.b16 %v376
    %v483 = vunpack.c.l.b16 %v377
    %v484 = vunpack.c.h.b16 %v377
    %v485 = vunpack.c.l.b16 %v378
    %v486 = vunpack.c.h.b16 %v378
    %v487 = vpack.c.b16 %v425, %v423
    %v488 = vpack.c.b16 %v426, %v424
    %v489 = vpack.c.b16 %v429, %v427
    %v490 = vpack.c.b16 %v430, %v428
    %v491 = vpack.c.b16 %v433, %v431
    %v492 = vpack.c.b16 %v434, %v432
    %v493 = vpack.c.b16 %v437, %v435
    %v494 = vpack.c.b16 %v438, %v436
    %v495 = vpack.c.b16 %v441, %v439
    %v496 = vpack.c.b16 %v442, %v440
    %v497 = vpack.c.b16 %v445, %v443
    %v498 = vpack.c.b16 %v446, %v444
    %v499 = vpack.c.b16 %v449, %v447
    %v500 = vpack.c.b16 %v450, %v448
    %v501 = vpack.c.b16 %v453, %v451
    %v502 = vpack.c.b16 %v454, %v452
    %v503 = vpack.c.b16 %v457, %v455
    %v504 = vpack.c.b16 %v458, %v456
    %v505 = vpack.c.b16 %v461, %v459
    %v506 = vpack.c.b16 %v462, %v460
    %v507 = vpack.c.b16 %v465, %v463
    %v508 = vpack.c.b16 %v466, %v464
    %v509 = vpack.c.b16 %v469, %v467
    %v510 = vpack.c.b16 %v470, %v468
    %v511 = vpack.c.b16 %v473, %v471
    %v512 = vpack.c.b16 %v474, %v472
    %v513 = vpack.c.b16 %v477, %v475
    %v514 = vpack.c.b16 %v478, %v476
    %v515 = vpack.c.b16 %v481, %v479
    %v516 = vpack.c.b16 %v482, %v480
    %v517 = vpack.c.b16 %v485, %v483
    %v518 = vpack.c.b16 %v486, %v484
    %551 = vmatprep.subr.bf16.mxu0 %v502
    %552 = vmatpush1.bf16.msra.mxu0 %v501
    %553 = vmatprep.subr.bf16.mxu0 %v500
    %554 = vmatpush1.bf16.msra.mxu0 %v499
    %555 = vmatprep.subr.bf16.mxu0 %v498
    %556 = vmatpush1.bf16.msra.mxu0 %v497
    %557 = vmatprep.subr.bf16.mxu0 %v496
    %558 = vmatpush1.bf16.msra.mxu0 %v495
    %559 = vmatprep.subr.bf16.mxu0 %v494
    %560 = vmatpush1.bf16.msra.mxu0 %v493
    %561 = vmatprep.subr.bf16.mxu0 %v492
    %562 = vmatpush1.bf16.msra.mxu0 %v491
    %563 = vmatprep.subr.bf16.mxu0 %v490
    %564 = vmatpush1.bf16.msra.mxu0 %v489
    %565 = vmatprep.subr.bf16.mxu0 %v488
    %566 = vmatpush1.bf16.msra.mxu0 %v487
    %567 = vmatprep.subr.bf16.mxu0 %v518
    %568 = vmatpush2.bf16.msra.mxu0 %v517
    %569 = vmatprep.subr.bf16.mxu0 %v516
    %570 = vmatpush2.bf16.msra.mxu0 %v515
    %571 = vmatprep.subr.bf16.mxu0 %v514
    %572 = vmatpush2.bf16.msra.mxu0 %v513
    %573 = vmatprep.subr.bf16.mxu0 %v512
    %574 = vmatpush2.bf16.msra.mxu0 %v511
    %575 = vmatprep.subr.bf16.mxu0 %v510
    %576 = vmatpush2.bf16.msra.mxu0 %v509
    %577 = vmatprep.subr.bf16.mxu0 %v508
    %578 = vmatpush2.bf16.msra.mxu0 %v507
    %579 = vmatprep.subr.bf16.mxu0 %v506
    %580 = vmatpush2.bf16.msra.mxu0 %v505
    %581 = vmatprep.subr.bf16.mxu0 %v504
    %582 = vmatpush2.bf16.msra.mxu0 %v503
    %583 = vmatprep.mubr.bf16.mxu0 %v346
    %584 = vmatmul.mubr.bf16.gmra.mxu0 %v345
    %v585 = vpop.f32.mrf.mxu0
    %v586 = vadd.f32 %v384, %v585
    %v587 = vpop.f32.mrf.mxu0
    %v588 = vadd.f32 %v388, %v587
    %v589 = vpop.f32.mrf.mxu0
    %v590 = vadd.f32 %v384, %v589
    %v591 = vpop.f32.mrf.mxu0
    %v592 = vadd.f32 %v388, %v591
    %593 = vdwg.mxu0
    %v594 = vmax.f32 %v586, 0.0
    %v595 = vmax.f32 %v588, 0.0
    %v596 = vmax.f32 %v590, 0.0
    %v597 = vmax.f32 %v592, 0.0
    %v598 = vpack.c.bf16 %v596, %v594
    %v599 = vpack.c.bf16 %v597, %v595
    %v600 = vld [vmem:[#allocation8] sm:$0xff]
    %v601 = vld [vmem:[#allocation8 + $0x8] sm:$0xff]
    %v602 = vld [vmem:[#allocation8 + $0x10] sm:$0xff]
    %v603 = vld [vmem:[#allocation8 + $0x18] sm:$0xff]
    %v604 = vld [vmem:[#allocation8 + $0x20] sm:$0xff]
    %v605 = vld [vmem:[#allocation8 + $0x28] sm:$0xff]
    %v606 = vld [vmem:[#allocation8 + $0x30] sm:$0xff]
    %v607 = vld [vmem:[#allocation8 + $0x38] sm:$0xff]
    %v608 = vld [vmem:[#allocation8 + $0x40] sm:$0xff]
    %v609 = vld [vmem:[#allocation8 + $0x48] sm:$0xff]
    %v610 = vld [vmem:[#allocation8 + $0x50] sm:$0xff]
    %v611 = vld [vmem:[#allocation8 + $0x58] sm:$0xff]
    %v612 = vld [vmem:[#allocation8 + $0x60] sm:$0xff]
    %v613 = vld [vmem:[#allocation8 + $0x68] sm:$0xff]
    %v614 = vld [vmem:[#allocation8 + $0x70] sm:$0xff]
    %v615 = vld [vmem:[#allocation8 + $0x78] sm:$0xff]
    %v616 = vld [vmem:[#allocation8 + $0x80] sm:$0xff]
    %v617 = vld [vmem:[#allocation8 + $0x88] sm:$0xff]
    %v618 = vld [vmem:[#allocation8 + $0x90] sm:$0xff]
    %v619 = vld [vmem:[#allocation8 + $0x98] sm:$0xff]
    %v620 = vld [vmem:[#allocation8 + $0xa0] sm:$0xff]
    %v621 = vld [vmem:[#allocation8 + $0xa8] sm:$0xff]
    %v622 = vld [vmem:[#allocation8 + $0xb0] sm:$0xff]
    %v623 = vld [vmem:[#allocation8 + $0xb8] sm:$0xff]
    %v624 = vld [vmem:[#allocation8 + $0xc0] sm:$0xff]
    %v625 = vld [vmem:[#allocation8 + $0xc8] sm:$0xff]
    %v626 = vld [vmem:[#allocation8 + $0xd0] sm:$0xff]
    %v627 = vld [vmem:[#allocation8 + $0xd8] sm:$0xff]
    %v628 = vld [vmem:[#allocation8 + $0xe0] sm:$0xff]
    %v629 = vld [vmem:[#allocation8 + $0xe8] sm:$0xff]
    %v630 = vld [vmem:[#allocation8 + $0xf0] sm:$0xff]
    %v631 = vld [vmem:[#allocation8 + $0xf8] sm:$0xff]
    %v632 = vld [vmem:[%s6] sm:$0x3]
    %v634 = vlaneseq
    %v635 = vshrl.u32 %v634, 7
    %v636 = vsub.s32 0, %v635
    %v637 = vrot.slane %v632, %v636
    %v638 = vlaneseq
    %v639 = vshrl.u32 %v638, 7
    %v640 = vsub.s32 1, %v639
    %v641 = vrot.slane %v632, %v640
    %v676 = vunpack.c.l.b16 %v600
    %v677 = vunpack.c.h.b16 %v600
    %v678 = vunpack.c.l.b16 %v601
    %v679 = vunpack.c.h.b16 %v601
    %v680 = vunpack.c.l.b16 %v602
    %v681 = vunpack.c.h.b16 %v602
    %v682 = vunpack.c.l.b16 %v603
    %v683 = vunpack.c.h.b16 %v603
    %v684 = vunpack.c.l.b16 %v604
    %v685 = vunpack.c.h.b16 %v604
    %v686 = vunpack.c.l.b16 %v605
    %v687 = vunpack.c.h.b16 %v605
    %v688 = vunpack.c.l.b16 %v606
    %v689 = vunpack.c.h.b16 %v606
    %v690 = vunpack.c.l.b16 %v607
    %v691 = vunpack.c.h.b16 %v607
    %v692 = vunpack.c.l.b16 %v608
    %v693 = vunpack.c.h.b16 %v608
    %v694 = vunpack.c.l.b16 %v609
    %v695 = vunpack.c.h.b16 %v609
    %v696 = vunpack.c.l.b16 %v610
    %v697 = vunpack.c.h.b16 %v610
    %v698 = vunpack.c.l.b16 %v611
    %v699 = vunpack.c.h.b16 %v611
    %v700 = vunpack.c.l.b16 %v612
    %v701 = vunpack.c.h.b16 %v612
    %v702 = vunpack.c.l.b16 %v613
    %v703 = vunpack.c.h.b16 %v613
    %v704 = vunpack.c.l.b16 %v614
    %v705 = vunpack.c.h.b16 %v614
    %v706 = vunpack.c.l.b16 %v615
    %v707 = vunpack.c.h.b16 %v615
    %v708 = vunpack.c.l.b16 %v616
    %v709 = vunpack.c.h.b16 %v616
    %v710 = vunpack.c.l.b16 %v617
    %v711 = vunpack.c.h.b16 %v617
    %v712 = vunpack.c.l.b16 %v618
    %v713 = vunpack.c.h.b16 %v618
    %v714 = vunpack.c.l.b16 %v619
    %v715 = vunpack.c.h.b16 %v619
    %v716 = vunpack.c.l.b16 %v620
    %v717 = vunpack.c.h.b16 %v620
    %v718 = vunpack.c.l.b16 %v621
    %v719 = vunpack.c.h.b16 %v621
    %v720 = vunpack.c.l.b16 %v622
    %v721 = vunpack.c.h.b16 %v622
    %v722 = vunpack.c.l.b16 %v623
    %v723 = vunpack.c.h.b16 %v623
    %v724 = vunpack.c.l.b16 %v624
    %v725 = vunpack.c.h.b16 %v624
    %v726 = vunpack.c.l.b16 %v625
    %v727 = vunpack.c.h.b16 %v625
    %v728 = vunpack.c.l.b16 %v626
    %v729 = vunpack.c.h.b16 %v626
    %v730 = vunpack.c.l.b16 %v627
    %v731 = vunpack.c.h.b16 %v627
    %v732 = vunpack.c.l.b16 %v628
    %v733 = vunpack.c.h.b16 %v628
    %v734 = vunpack.c.l.b16 %v629
    %v735 = vunpack.c.h.b16 %v629
    %v736 = vunpack.c.l.b16 %v630
    %v737 = vunpack.c.h.b16 %v630
    %v738 = vunpack.c.l.b16 %v631
    %v739 = vunpack.c.h.b16 %v631
    %v740 = vpack.c.b16 %v678, %v676
    %v741 = vpack.c.b16 %v679, %v677
    %v742 = vpack.c.b16 %v682, %v680
    %v743 = vpack.c.b16 %v683, %v681
    %v744 = vpack.c.b16 %v686, %v684
    %v745 = vpack.c.b16 %v687, %v685
    %v746 = vpack.c.b16 %v690, %v688
    %v747 = vpack.c.b16 %v691, %v689
    %v748 = vpack.c.b16 %v694, %v692
    %v749 = vpack.c.b16 %v695, %v693
    %v750 = vpack.c.b16 %v698, %v696
    %v751 = vpack.c.b16 %v699, %v697
    %v752 = vpack.c.b16 %v702, %v700
    %v753 = vpack.c.b16 %v703, %v701
    %v754 = vpack.c.b16 %v706, %v704
    %v755 = vpack.c.b16 %v707, %v705
    %v756 = vpack.c.b16 %v710, %v708
    %v757 = vpack.c.b16 %v711, %v709
    %v758 = vpack.c.b16 %v714, %v712
    %v759 = vpack.c.b16 %v715, %v713
    %v760 = vpack.c.b16 %v718, %v716
    %v761 = vpack.c.b16 %v719, %v717
    %v762 = vpack.c.b16 %v722, %v720
    %v763 = vpack.c.b16 %v723, %v721
    %v764 = vpack.c.b16 %v726, %v724
    %v765 = vpack.c.b16 %v727, %v725
    %v766 = vpack.c.b16 %v730, %v728
    %v767 = vpack.c.b16 %v731, %v729
    %v768 = vpack.c.b16 %v734, %v732
    %v769 = vpack.c.b16 %v735, %v733
    %v770 = vpack.c.b16 %v738, %v736
    %v771 = vpack.c.b16 %v739, %v737
    %804 = vmatprep.subr.bf16.mxu0 %v755
    %805 = vmatpush1.bf16.msra.mxu0 %v754
    %806 = vmatprep.subr.bf16.mxu0 %v753
    %807 = vmatpush1.bf16.msra.mxu0 %v752
    %808 = vmatprep.subr.bf16.mxu0 %v751
    %809 = vmatpush1.bf16.msra.mxu0 %v750
    %810 = vmatprep.subr.bf16.mxu0 %v749
    %811 = vmatpush1.bf16.msra.mxu0 %v748
    %812 = vmatprep.subr.bf16.mxu0 %v747
    %813 = vmatpush1.bf16.msra.mxu0 %v746
    %814 = vmatprep.subr.bf16.mxu0 %v745
    %815 = vmatpush1.bf16.msra.mxu0 %v744
    %816 = vmatprep.subr.bf16.mxu0 %v743
    %817 = vmatpush1.bf16.msra.mxu0 %v742
    %818 = vmatprep.subr.bf16.mxu0 %v741
    %819 = vmatpush1.bf16.msra.mxu0 %v740
    %820 = vmatprep.subr.bf16.mxu0 %v771
    %821 = vmatpush2.bf16.msra.mxu0 %v770
    %822 = vmatprep.subr.bf16.mxu0 %v769
    %823 = vmatpush2.bf16.msra.mxu0 %v768
    %824 = vmatprep.subr.bf16.mxu0 %v767
    %825 = vmatpush2.bf16.msra.mxu0 %v766
    %826 = vmatprep.subr.bf16.mxu0 %v765
    %827 = vmatpush2.bf16.msra.mxu0 %v764
    %828 = vmatprep.subr.bf16.mxu0 %v763
    %829 = vmatpush2.bf16.msra.mxu0 %v762
    %830 = vmatprep.subr.bf16.mxu0 %v761
    %831 = vmatpush2.bf16.msra.mxu0 %v760
    %832 = vmatprep.subr.bf16.mxu0 %v759
    %833 = vmatpush2.bf16.msra.mxu0 %v758
    %834 = vmatprep.subr.bf16.mxu0 %v757
    %835 = vmatpush2.bf16.msra.mxu0 %v756
    %836 = vmatprep.mubr.bf16.mxu0 %v599
    %837 = vmatmul.mubr.bf16.gmra.mxu0 %v598
    %v838 = vpop.f32.mrf.mxu0
    %v839 = vadd.f32 %v637, %v838
    %v840 = vpop.f32.mrf.mxu0
    %v841 = vadd.f32 %v641, %v840
    %v842 = vpop.f32.mrf.mxu0
    %v843 = vadd.f32 %v637, %v842
    %v844 = vpop.f32.mrf.mxu0
    %v845 = vadd.f32 %v641, %v844
    %846 = vdwg.mxu0
    %847 = vst [vmem:[#allocation10] sm:$0xff] %v839
    %848 = vst [vmem:[#allocation10 + $0x8] sm:$0xff] %v841
    %849 = vst [vmem:[#allocation10 + $0x10] sm:$0xff] %v843
    %850 = vst [vmem:[#allocation10 + $0x18] sm:$0xff] %v845
    // Predicated region
    $region46: #{tpu_custom_call.1} parent=1 // pred_check
      _
    $region47: #{tpu_custom_call.1} parent=1 // pred_check_branch
      %852 = sbr.rel (0) target = $region49
    $region48: #{tpu_custom_call.1} parent=1 // pred_region
      %s854 = ssub.s32 512, 512
      %855 = vsyncadd [#allocation4], %s854
      %s856 = sshll.u32 [#allocation10], 4
      %s857 = int_to_ptr.vmem [resolvable:$true] %s856
      %862 = dma.vmem_to_hbm [thread:$0]  %s857, 512, %s7, [#allocation4], 256, 256, 16
    $region49: #{tpu_custom_call.1} parent=1 // pred_fallthru
      _
    // Predicated region
    $region50: #{tpu_custom_call.1} parent=1 // pred_check
      _
    $region51: #{tpu_custom_call.1} parent=1 // pred_check_branch
      %864 = sbr.rel (0) target = $region53
    $region52: #{tpu_custom_call.1} parent=1 // pred_region
      %865 = dma.done [#allocation4], 512
    $region53: #{tpu_custom_call.1} parent=1 // pred_fallthru
      _
    %866 = vsyncpa [#allocation3], 1
    %867 = vsyncpa [#allocation6], 1
    %868 = vsyncpa [#allocation9], 1
    %869 = vsyncpa [#allocation4], 1

</llo_original>
